<compile_context>
chip_gen: v7x
topology: tpu7x:2x2x1
jax: 0.10.0
libtpu: 0.0.40
codegen_flags: <defaults>
</compile_context>

<pallas_src>
import jax
import jax.numpy as jnp
from jax.experimental import pallas as pl
from jax.experimental.pallas import tpu as pltpu


# ----------------------------- Pallas kernel -------------------------------

def _identity_kernel(x_ref, o_ref):
    """Lane-dense tile copy (the reference forward is an identity)."""
    o_ref[...] = x_ref[...]


def pallas_identity(x, *, max_block_rows=512):
    """Copy `x` through a single Pallas kernel with 128-lane-dense tiles."""
    orig_shape, dtype = x.shape, x.dtype
    n = x.size
    lanes = 128

    rows = -(-n // lanes)                      # ceil(n / 128)
    rows = -(-rows // 8) * 8                   # sublane multiple (8)
    block_rows = min(max_block_rows, rows)     # both are multiples of 8
    rows = -(-rows // block_rows) * block_rows # grid divides evenly

    flat = jnp.ravel(x)
    pad = rows * lanes - n
    if pad:
        flat = jnp.pad(flat, (0, pad))
    x2d = flat.reshape(rows, lanes)

    out2d = pl.pallas_call(
        _identity_kernel,
        grid=(rows // block_rows,),
        out_shape=jax.ShapeDtypeStruct((rows, lanes), dtype),
        in_specs=[pl.BlockSpec((block_rows, lanes), lambda i: (i, 0))],
        out_specs=pl.BlockSpec((block_rows, lanes), lambda i: (i, 0)),
        compiler_params=pltpu.CompilerParams(
            dimension_semantics=("parallel",)),   # megacore-shardable on v7x
    )(x2d)

    return out2d.reshape(-1)[:n].reshape(orig_shape)


# ------------------------ parameters (structural only) ----------------------
# Mirrors Detect.__init__.  NOT used by forward (reference forward returns x).

def _make_cba_params(key, c_in, c_out, k):
    kw, kg, kb, km, kv = jax.random.split(key, 5)
    fan_in = c_in * k * k
    w = jax.random.normal(kw, (c_out, c_in, k, k), jnp.float32) * (
        2.0 / fan_in) ** 0.5
    return {
        "w": w,                                                   # Conv2d, bias=False
        "gamma": 1.0 + 0.1 * jax.random.normal(kg, (c_out,), jnp.float32),
        "beta": 0.1 * jax.random.normal(kb, (c_out,), jnp.float32),
        "mean": 0.1 * jax.random.normal(km, (c_out,), jnp.float32),
        "var": jax.random.uniform(kv, (c_out,), jnp.float32, 0.5, 1.5),
    }


def init_params(seed=0):
    key = jax.random.PRNGKey(seed)
    encode = [16, 32, 64, 128]
    blocks = []
    c_in = 3
    for c in encode:
        key, k1, k2 = jax.random.split(key, 3)
        # CBABlock(c_in, c, k=1, act=False)
        blocks.append(dict(params=_make_cba_params(k1, c_in, c, 1),
                           k=1, s=1, p=0, act=False))
        # CBABlock(c, c, s=2, p=1)  (k=3, ReLU6)
        blocks.append(dict(params=_make_cba_params(k2, c, c, 3),
                           k=3, s=2, p=1, act=True))
        c_in = c
    # TODO(synk): encode_list parameters are never used by Detect.forward in
    # the reference module; they are kept only for structural fidelity.
    return {"blocks": blocks}


# -------------------------------- forward ----------------------------------

def detect_forward(params, x_nchw):
    """Reference: `def forward(self, x): return x` (encode_list unused)."""
    del params  # unused, exactly as in the PyTorch module's forward
    return pallas_identity(x_nchw)


# ---------------------------------- main ------------------------------------

if __name__ == "__main__":
    key = jax.random.PRNGKey(0)
    x = jax.random.normal(key, (2, 3, 16, 16), jnp.float32)   # NCHW like PyTorch

    params = init_params(seed=0)
    fwd = jax.jit(detect_forward)
    out = jax.block_until_ready(fwd(params, x))

    assert out.shape == x.shape, out.shape
    assert out.dtype == x.dtype, out.dtype
    assert bool(jnp.all(out == x))          # forward is an exact identity
    print("KERNEL_OK")
</pallas_src>

<mosaic_0001>
module attributes {stable_mosaic.version = 11 : i64} {
  func.func @_identity_kernel(%arg0: i32, %arg1: memref<16x128xf32, #tpu.memory_space<vmem>>, %arg2: memref<16x128xf32, #tpu.memory_space<vmem>>) attributes {dimension_semantics = [#tpu.dimension_semantics<parallel>], iteration_bounds = array<i64: 1>, scalar_prefetch = 0 : i64, scratch_operands = 0 : i64, tpu.core_type = #tpu.core_type<tc>, window_params = [{transform_indices = @transform_0, window_bounds = array<i64: 16, 128>}, {transform_indices = @transform_1, window_bounds = array<i64: 16, 128>}]} {
    %c0 = arith.constant 0 : index
    %c0_0 = arith.constant 0 : index
    %0 = vector.load %arg1[%c0, %c0_0] : memref<16x128xf32, #tpu.memory_space<vmem>>, vector<16x128xf32>
    %c0_1 = arith.constant 0 : index
    %c0_2 = arith.constant 0 : index
    %1 = vector.load %arg2[%c0_1, %c0_2] : memref<16x128xf32, #tpu.memory_space<vmem>>, vector<16x128xf32>
    tpu.vector_store %arg2[%c0_1, %c0_2], %0 {strides = array<i32>} : memref<16x128xf32, #tpu.memory_space<vmem>>, vector<16x128xf32>,
    return
  }
  func.func @transform_0(%arg0: i32) -> (i32, i32) {
    %c0_i32 = arith.constant 0 : i32
    %c0_i32_0 = arith.constant 0 : i32
    return %arg0, %c0_i32 : i32, i32
  }
  func.func @transform_1(%arg0: i32) -> (i32, i32) {
    %c0_i32 = arith.constant 0 : i32
    %c0_i32_0 = arith.constant 0 : i32
    return %arg0, %c0_i32 : i32, i32
  }
}

</mosaic_0001>

<llo_original>
// kernel: detect_forward.1
$region0: #{detect_forward.1}
  #allocation0 [shape = 'u32[]', space=smem, size = 0x4, offset = 0x4, fixed_abs, tag = 'smem constant byte address 0x4 - core index']
  #allocation1 [shape = 'u32[144,128]{1,0:T(1,128)}', space=vmem, size = 0x12000, scoped, tag = 'internal scratch']
  %s0 = inlined_call_operand.vmem [shape: f32[16,128], index: 0, kind: input, shape index: {}]
  %s1 = inlined_call_operand.vmem [shape: f32[16,128], index: 1, kind: output, shape index: {}]
  %s2 = sld [smem:[#allocation0]]
  $region14: #{detect_forward.1} parent=0
    _
  %s4 = ssub.s32 1, %s2
  %s5 = scalar_select 0, %s4, %s2
  // Predicated region
  $region2: #{detect_forward.1} parent=0 // pred_check
    _
  $region3: #{detect_forward.1} parent=0 // pred_check_branch
    %7 = sbr.rel (0) target = $region5
  $region4: #{detect_forward.1} parent=0 // pred_region
    _
  $region5: #{detect_forward.1} parent=0 // pred_fallthru
    _
  %v8 = vld [vmem:[%s0] sm:$0xff]
  %v9 = vld [vmem:[%s0 + $0x8] sm:$0xff]
  %10 = vst [vmem:[%s1] sm:$0xff] %v8
  %11 = vst [vmem:[%s1 + $0x8] sm:$0xff] %v9
  // Predicated region
  $region6: #{detect_forward.1} parent=0 // pred_check
    _
  $region7: #{detect_forward.1} parent=0 // pred_check_branch
    %13 = sbr.rel (0) target = $region9
  $region8: #{detect_forward.1} parent=0 // pred_region
    _
  $region9: #{detect_forward.1} parent=0 // pred_fallthru
    _
  // Predicated region
  $region10: #{detect_forward.1} parent=0 // pred_check
    _
  $region11: #{detect_forward.1} parent=0 // pred_check_branch
    %15 = sbr.rel (0) target = $region13
  $region12: #{detect_forward.1} parent=0 // pred_region
    _
  $region13: #{detect_forward.1} parent=0 // pred_fallthru
    _

</llo_original>
